<compile_context>
chip_gen: v7x
topology: tpu7x:2x2x1
jax: 0.10.0
libtpu: 0.0.40
codegen_flags: <defaults>
</compile_context>

<pallas_src>
import functools

import jax
import jax.numpy as jnp
from jax.experimental import pallas as pl
from jax.experimental.pallas import tpu as pltpu


def _round_up(x, m):
    return ((x + m - 1) // m) * m


def _select_tm(M, Kcp, TC, out_itemsize):
    """Pick the M tile and an explicit VMEM limit (VMEM-budget aware)."""
    def footprint(tm):
        return (2 * tm * Kcp * 2            # patches (bf16, double-buffered)
                + 2 * Kcp * TC * 2          # weights (bf16, double-buffered)
                + 2 * 8 * TC * 4            # packed scale/shift/alpha (f32)
                + 2 * tm * TC * out_itemsize)  # output (double-buffered)

    budget = 48 * 1024 * 1024  # conservative: fits v7x's 64 MiB physical VMEM
    if M <= 128:
        tm = _round_up(max(M, 8), 8)
    else:
        candidates = [1024, 512, 256, 128]
        fitting = [t for t in candidates if footprint(t) <= budget] or [128]
        # Keep >= 2 M-tiles when possible so both v7x TensorCores get work.
        multi = [t for t in fitting if (M + t - 1) // t >= 2]
        tm = (multi or fitting)[0]
    limit = int(min(max(footprint(tm) * 2, 32 * 1024 * 1024),
                    64 * 1024 * 1024))
    return tm, limit


def _gemm_bn_act_kernel(x_ref, w_ref, p_ref, o_ref, *, activ, has_bn):
    # x_ref: (TM, Kcp) bf16 im2col rows      w_ref: (Kcp, TC) bf16 weights
    # p_ref: (8, TC)   f32 packed params (row 0 scale, 1 shift, 2 alpha)
    # o_ref: (TM, TC)  lane-dense output tile
    acc = jnp.dot(x_ref[...], w_ref[...], preferred_element_type=jnp.float32)
    # static Python switches -- resolved at trace time
    y = acc * p_ref[0:1, :] + p_ref[1:2, :] if has_bn else acc
    if activ == 'prelu':
        y = jnp.where(y >= 0, y, p_ref[2:3, :] * y)
    elif activ == 'relu':
        y = jnp.maximum(y, 0.0)
    elif activ == 'sigmoid':
        y = jax.nn.sigmoid(y)
    elif activ == 'none':
        pass
    else:
        raise ValueError(f"Unsupported activation: {activ}")
    o_ref[...] = y.astype(o_ref.dtype)


def conv2d_block(x_nchw, weight_oihw, *, padding=0, stride=1, group=1,
                 bn_params=None, prelu_alpha=None, activ='none',
                 out_dtype=jnp.float32, out_layout='NCHW'):
    """Pallas implementation of Conv2dBlock.forward (eval-mode BN).

    bn_params: None, or (gamma, beta, running_mean, running_var, eps).
    prelu_alpha: None (-> nn.PReLU() default 0.25), scalar, or (Cout,) slopes.
    out_dtype: kernel output dtype (bf16 halves writeback if tolerated).
    out_layout: 'NCHW' (PyTorch-compatible, default) or 'NHWC'.
    """
    assert group == 1, "grouped convolution (group > 1) is not implemented"
    N, Cin, H, W = x_nchw.shape
    Cout, Cin_w, KH, KW = weight_oihw.shape
    assert Cin_w == Cin, "in_chan mismatch"

    OH = (H + 2 * padding - KH) // stride + 1
    OW = (W + 2 * padding - KW) // stride + 1

    # ---------------- wrapper-side layout prep (XLA) ----------------------
    # TODO(synk): keep activations NHWC end-to-end across the model to drop
    # the wrapper transposes (and feed the im2col slab straight through).
    x = jnp.transpose(x_nchw, (0, 2, 3, 1))          # NCHW -> NHWC
    if padding > 0:
        x = jnp.pad(x, ((0, 0), (padding, padding), (padding, padding), (0, 0)))
    # Cast to bf16 BEFORE im2col so the KH*KW-times-larger slab is bf16-only.
    x = x.astype(jnp.bfloat16)

    # im2col: one lane-dense (M, Kc) slab, M = N*OH*OW.
    taps = []
    for kh in range(KH):
        for kw in range(KW):
            taps.append(x[:, kh:kh + stride * (OH - 1) + 1:stride,
                           kw:kw + stride * (OW - 1) + 1:stride, :])
    patches = jnp.concatenate(taps, axis=-1)          # (N, OH, OW, Kc) bf16
    Kc = KH * KW * Cin
    Kcp = _round_up(Kc, 16)     # bf16 sublane pack for the weight's sublane dim
    M = N * OH * OW
    patches = patches.reshape(M, Kc)
    if Kcp != Kc:
        patches = jnp.pad(patches, ((0, 0), (0, Kcp - Kc)))

    # Cout padding / Cout tiling (keeps the resident weight slab bounded).
    Cp = _round_up(Cout, 128)
    TC = Cp if Cp <= 512 else 256
    if Cp % TC:
        Cp = _round_up(Cp, TC)

    out_dtype = jnp.dtype(out_dtype)
    TM, vmem_limit = _select_tm(M, Kcp, TC, out_dtype.itemsize)
    Mp = _round_up(M, TM)
    if Mp != M:
        patches = jnp.pad(patches, ((0, Mp - M), (0, 0)))

    # Weights OIHW -> (Kcp, Cp), bf16, zero-padded (zeros don't contribute).
    w = jnp.transpose(weight_oihw, (2, 3, 1, 0)).reshape(Kc, Cout)
    w = jnp.pad(w.astype(jnp.bfloat16), ((0, Kcp - Kc), (0, Cp - Cout)))

    # Packed per-channel epilogue params (one small DMA instead of three).
    has_bn = bn_params is not None
    if has_bn:
        gamma, beta, mean, var, eps = bn_params
        scale = (gamma / jnp.sqrt(var + eps)).astype(jnp.float32)
        shift = (beta - mean * scale).astype(jnp.float32)
    else:
        scale = jnp.ones((Cout,), jnp.float32)
        shift = jnp.zeros((Cout,), jnp.float32)
    if activ == 'prelu':
        if prelu_alpha is None:
            prelu_alpha = 0.25                 # nn.PReLU() default init
        alpha = jnp.asarray(prelu_alpha, jnp.float32).reshape(-1)
        if alpha.shape[0] == 1:
            alpha = jnp.broadcast_to(alpha, (Cout,))
        assert alpha.shape[0] == Cout, "PReLU alpha must be scalar or (Cout,)"
    else:
        alpha = jnp.zeros((Cout,), jnp.float32)
    params = jnp.zeros((8, Cp), jnp.float32)
    params = params.at[0, :Cout].set(scale)
    params = params.at[1, :Cout].set(shift)
    params = params.at[2, :Cout].set(alpha)

    kernel = functools.partial(_gemm_bn_act_kernel, activ=activ, has_bn=has_bn)

    # Grid: Cout tiles OUTER, M tiles INNER -> weight slab resident across M.
    out = pl.pallas_call(
        kernel,
        out_shape=jax.ShapeDtypeStruct((Mp, Cp), out_dtype),
        grid=(Cp // TC, Mp // TM),
        in_specs=[
            pl.BlockSpec((TM, Kcp), lambda c, m: (m, 0)),
            pl.BlockSpec((Kcp, TC), lambda c, m: (0, c)),
            pl.BlockSpec((8, TC), lambda c, m: (0, c)),
        ],
        out_specs=pl.BlockSpec((TM, TC), lambda c, m: (m, c)),
        compiler_params=pltpu.CompilerParams(
            dimension_semantics=("parallel", "parallel"),
            vmem_limit_bytes=vmem_limit),
    )(patches, w, params)

    out = out[:M, :Cout].reshape(N, OH, OW, Cout)
    if out_layout == 'NHWC':
        return out
    return jnp.transpose(out, (0, 3, 1, 2))            # NHWC -> NCHW


def _reference_forward(x, weight, *, padding, stride, bn_params=None,
                       prelu_alpha=None, activ='none'):
    """Plain-JAX reference replicating the PyTorch forward (eval-mode BN)."""
    y = jax.lax.conv_general_dilated(
        x, weight, window_strides=(stride, stride),
        padding=[(padding, padding), (padding, padding)],
        dimension_numbers=('NCHW', 'OIHW', 'NCHW'),
        precision=jax.lax.Precision.HIGHEST)
    if bn_params is not None:
        gamma, beta, mean, var, eps = bn_params
        scale = gamma / jnp.sqrt(var + eps)
        shift = beta - mean * scale
        y = y * scale[None, :, None, None] + shift[None, :, None, None]
    if activ == 'prelu':
        a = jnp.asarray(prelu_alpha, jnp.float32).reshape(-1)
        a = a[0] if a.shape[0] == 1 else a[None, :, None, None]
        y = jnp.where(y >= 0, y, a * y)
    elif activ == 'relu':
        y = jnp.maximum(y, 0.0)
    elif activ == 'sigmoid':
        y = jax.nn.sigmoid(y)
    return y


if __name__ == "__main__":
    key = jax.random.PRNGKey(0)
    k_x, k_w, k_g, k_b, k_m, k_v = jax.random.split(key, 6)

    N, Cin, H, W = 2, 4, 16, 16
    Cout, K = 8, 3
    eps = 1e-5

    x = jax.random.normal(k_x, (N, Cin, H, W), jnp.float32)
    weight = jax.random.normal(k_w, (Cout, Cin, K, K), jnp.float32) * 0.1
    gamma = 1.0 + 0.1 * jax.random.normal(k_g, (Cout,), jnp.float32)
    beta = 0.1 * jax.random.normal(k_b, (Cout,), jnp.float32)
    running_mean = 0.1 * jax.random.normal(k_m, (Cout,), jnp.float32)
    running_var = 1.0 + 0.5 * jnp.abs(jax.random.normal(k_v, (Cout,), jnp.float32))
    prelu_alpha = jnp.float32(0.25)   # nn.PReLU() default init
    bn = (gamma, beta, running_mean, running_var, eps)

    # Reference uses the same bf16-rounded operands the MXU sees (f32 accum).
    xb = x.astype(jnp.bfloat16).astype(jnp.float32)
    wb = weight.astype(jnp.bfloat16).astype(jnp.float32)

    # --- Test 1: Conv2dBlock(4->8, k=3, pad=1, stride=1, norm='bn', prelu),
    #     f32 output ---
    out1 = conv2d_block(x, weight, padding=1, stride=1, bn_params=bn,
                        prelu_alpha=prelu_alpha, activ='prelu')
    out1 = jax.block_until_ready(out1)
    ref1 = _reference_forward(xb, wb, padding=1, stride=1, bn_params=bn,
                              prelu_alpha=prelu_alpha, activ='prelu')
    ref1 = jax.block_until_ready(ref1)
    assert out1.shape == (N, Cout, H, W), out1.shape
    assert jnp.allclose(out1, ref1, rtol=1e-3, atol=1e-3), \
        f"test1 max abs err {jnp.max(jnp.abs(out1 - ref1))}"

    # --- Test 2: Conv2dBlock(4->8, k=3, pad=1, stride=2, norm='none', relu),
    #     bf16 output (halved writeback) ---
    out2 = conv2d_block(x, weight, padding=1, stride=2, bn_params=None,
                        prelu_alpha=None, activ='relu',
                        out_dtype=jnp.bfloat16)
    out2 = jax.block_until_ready(out2)
    ref2 = _reference_forward(xb, wb, padding=1, stride=2, bn_params=None,
                              prelu_alpha=None, activ='relu')
    ref2 = jax.block_until_ready(ref2)
    assert out2.shape == (N, Cout, 8, 8), out2.shape
    assert jnp.allclose(out2.astype(jnp.float32), ref2,
                        rtol=2e-2, atol=2e-2), \
        f"test2 max abs err {jnp.max(jnp.abs(out2.astype(jnp.float32) - ref2))}"

    print("KERNEL_OK")
</pallas_src>

<mosaic_0001>
module attributes {stable_mosaic.version = 11 : i64} {
  func.func @_gemm_bn_act_kernel(%arg0: i32, %arg1: i32, %arg2: memref<256x48xbf16, #tpu.memory_space<vmem>>, %arg3: memref<48x128xbf16, #tpu.memory_space<vmem>>, %arg4: memref<8x128xf32, #tpu.memory_space<vmem>>, %arg5: memref<256x128xf32, #tpu.memory_space<vmem>>) attributes {dimension_semantics = [#tpu.dimension_semantics<parallel>, #tpu.dimension_semantics<parallel>], iteration_bounds = array<i64: 1, 2>, scalar_prefetch = 0 : i64, scratch_operands = 0 : i64, tpu.core_type = #tpu.core_type<tc>, window_params = [{transform_indices = @transform_0, window_bounds = array<i64: 256, 48>}, {transform_indices = @transform_1, window_bounds = array<i64: 48, 128>}, {transform_indices = @transform_2, window_bounds = array<i64: 8, 128>}, {transform_indices = @transform_3, window_bounds = array<i64: 256, 128>}]} {
    %c0 = arith.constant 0 : index
    %c0_0 = arith.constant 0 : index
    %0 = vector.load %arg2[%c0, %c0_0] : memref<256x48xbf16, #tpu.memory_space<vmem>>, vector<256x48xbf16>
    %c0_1 = arith.constant 0 : index
    %c0_2 = arith.constant 0 : index
    %1 = vector.load %arg3[%c0_1, %c0_2] : memref<48x128xbf16, #tpu.memory_space<vmem>>, vector<48x128xbf16>
    %cst = arith.constant dense<0.000000e+00> : vector<256x128xf32>
    %2 = tpu.matmul %0, %1, %cst {dimension_numbers = #tpu.dot_dimension_numbers<[1], [0], [0], [1], [0, 0, 1, 1], [], []>} : vector<256x48xbf16>, vector<48x128xbf16>, vector<256x128xf32> -> vector<256x128xf32>
    %c0_3 = arith.constant 0 : index
    %c0_4 = arith.constant 0 : index
    %3 = vector.load %arg4[%c0_3, %c0_4] : memref<8x128xf32, #tpu.memory_space<vmem>>, vector<1x128xf32>
    %4 = vector.broadcast %3 : vector<1x128xf32> to vector<256x128xf32>
    %5 = arith.mulf %2, %4 : vector<256x128xf32>
    %c1 = arith.constant 1 : index
    %c0_5 = arith.constant 0 : index
    %6 = vector.load %arg4[%c1, %c0_5] : memref<8x128xf32, #tpu.memory_space<vmem>>, vector<1x128xf32>
    %7 = vector.broadcast %6 : vector<1x128xf32> to vector<256x128xf32>
    %8 = arith.addf %5, %7 : vector<256x128xf32>
    %cst_6 = arith.constant 0.000000e+00 : f32
    %9 = vector.broadcast %cst_6 : f32 to vector<256x128xf32>
    %10 = arith.cmpf oge, %8, %9 : vector<256x128xf32>
    %c2 = arith.constant 2 : index
    %c0_7 = arith.constant 0 : index
    %11 = vector.load %arg4[%c2, %c0_7] : memref<8x128xf32, #tpu.memory_space<vmem>>, vector<1x128xf32>
    %12 = vector.broadcast %11 : vector<1x128xf32> to vector<256x128xf32>
    %13 = arith.mulf %12, %8 : vector<256x128xf32>
    %14 = arith.select %10, %8, %13 : vector<256x128xi1>, vector<256x128xf32>
    %c0_8 = arith.constant 0 : index
    %c0_9 = arith.constant 0 : index
    %15 = vector.load %arg5[%c0_8, %c0_9] : memref<256x128xf32, #tpu.memory_space<vmem>>, vector<256x128xf32>
    tpu.vector_store %arg5[%c0_8, %c0_9], %14 {strides = array<i32>} : memref<256x128xf32, #tpu.memory_space<vmem>>, vector<256x128xf32>,
    return
  }
  func.func @transform_0(%arg0: i32, %arg1: i32) -> (i32, i32) {
    %c0_i32 = arith.constant 0 : i32
    %c0_i32_0 = arith.constant 0 : i32
    return %arg1, %c0_i32 : i32, i32
  }
  func.func @transform_1(%arg0: i32, %arg1: i32) -> (i32, i32) {
    %c0_i32 = arith.constant 0 : i32
    %c0_i32_0 = arith.constant 0 : i32
    return %c0_i32, %arg0 : i32, i32
  }
  func.func @transform_2(%arg0: i32, %arg1: i32) -> (i32, i32) {
    %c0_i32 = arith.constant 0 : i32
    %c0_i32_0 = arith.constant 0 : i32
    return %c0_i32, %arg0 : i32, i32
  }
  func.func @transform_3(%arg0: i32, %arg1: i32) -> (i32, i32) {
    %c0_i32 = arith.constant 0 : i32
    return %arg1, %arg0 : i32, i32
  }
}

</mosaic_0001>

<llo_original>
// kernel: tpu_custom_call.1
$region0: #{tpu_custom_call.1}
  #allocation0 [shape = 'u32[]', space=smem, size = 0x4, offset = 0x4, fixed_abs, tag = 'smem constant byte address 0x4 - core index']
  #allocation1 [shape = 'u32[144,128]{1,0:T(1,128)}', space=vmem, size = 0x12000, scoped, tag = 'internal scratch']
  %s0 = inlined_call_operand.vmem [shape: bf16[512,48], index: 0, kind: input, shape index: {}]
  %s1 = inlined_call_operand.vmem [shape: bf16[48,128], index: 1, kind: input, shape index: {}]
  %s2 = inlined_call_operand.vmem [shape: f32[8,128], index: 2, kind: input, shape index: {}]
  %s3 = inlined_call_operand.hbm [shape: f32[512,128], index: 3, kind: output, shape index: {}]
  %s4 = sld [smem:[#allocation0]]
  $region45: #{tpu_custom_call.1} parent=0
    _
  %s6 = ssub.s32 1, %s4
  %s7 = scalar_select 0, %s6, %s4
  $region1: #{tpu_custom_call.1} parent=0
    #allocation2 [shape = 'u8[262144]{0}', space=vmem, size = 0x40000, scoped, tag = 'output window, operand 0']
    #allocation3 [shape = 's32[2]{0}', space=sflag, size = 0x8, scoped, tag = 'scoped memory for tpu_custom_call.1']
    %8 = vsyncpa [#allocation3], 0
    %s9 = scalar_lea.sflag [#allocation3], 1
    %10 = vsyncpa %s9, 0
    loop: start=0, step=1, limit=4
    $region2: #{tpu_custom_call.1} parent=1 // loop_pre_header
      _
    $region3: #{tpu_custom_call.1} parent=1 // loop_header
      %s12 = sphi 0, %s16
      %p13 = scmp.ge.s32.totalorder %s12, 4
      %s19 = sphi 0, %s31
      %s20 = sphi 0, %s27
      %s21 = sphi 0, %s19
      %s22 = sphi 0, %s20
      %s23 = sphi 0, %s21
      %s24 = sphi 0, %s22
      %s34 = sphi 0, %s36
      %s37 = sphi 0, %s34
      %s38 = sphi 0, %s37
      %s54 = sphi 0, %s38
      %s60 = sphi 0, %s62
      %s63 = sphi 0, %s60
      %s64 = sphi 0, %s63
      %s80 = sphi 0, %s64
      %s86 = sphi 0, %s88
      %s89 = sphi 0, %s86
      %s90 = sphi 0, %s89
      %s106 = sphi 0, %s90
      %s114 = sphi 0, %s116
      %s117 = sphi 0, %s114
      %s118 = sphi 0, %s117
      %s134 = sphi 0, %s118
    $region4: #{tpu_custom_call.1} parent=1 // loop_header_branch
      %15 = sbr.rel (%p13) target = $region8
    $region5: #{tpu_custom_call.1} parent=1 // loop_body
      %s17 = ssub.s32 %s12, 1
      %s18 = ssub.s32 %s12, 2
      %s25 = sadd.s32 1, %s20
      %p26 = scmp.ge.s32.totalorder %s25, 2
      %s27 = scalar_select %p26, 0, %s25
      %s28 = sadd.s32 1, %s19
      %s29 = scalar_select %p26, %s28, %s19
      %p30 = scmp.ge.s32.totalorder %s29, 1
      %s31 = scalar_select %p30, 0, %s29
      %s32 = ssub.s32 %s20, %s27
      %p33 = scmp.eq.s32.totalorder %s32, 0
      %s35 = sadd.s32 %s34, 1
      %s36 = scalar_select %p33, %s34, %s35
      %p39 = pneg %p33
      %p40 = scmp.eq.s32.totalorder %s12, 1
      %p41 = por %p39, %p40
      %p42 = scmp.ne.s32.totalorder %s34, %s37
      %p43 = scmp.eq.s32.totalorder %s12, 0
      %p44 = por %p42, %p43
      %p45 = scmp.ne.s32.totalorder %s34, %s37
      %p46 = scmp.eq.s32.totalorder %s17, 1
      %p47 = por %p45, %p46
      %p48 = scmp.ne.s32.totalorder %s37, %s38
      %p49 = scmp.eq.s32.totalorder %s17, 0
      %p50 = por %p48, %p49
      %p51 = scmp.ne.s32.totalorder %s37, %s38
      %p52 = scmp.eq.s32.totalorder %s18, 1
      %p53 = por %p51, %p52
      %p55 = scmp.ne.s32.totalorder %s38, %s54
      %p56 = scmp.eq.s32.totalorder %s18, 0
      %p57 = por %p55, %p56
      %s58 = ssub.s32 %s19, %s31
      %p59 = scmp.eq.s32.totalorder %s58, 0
      %s61 = sadd.s32 %s60, 1
      %s62 = scalar_select %p59, %s60, %s61
      %p65 = pneg %p59
      %p66 = scmp.eq.s32.totalorder %s12, 1
      %p67 = por %p65, %p66
      %p68 = scmp.ne.s32.totalorder %s60, %s63
      %p69 = scmp.eq.s32.totalorder %s12, 0
      %p70 = por %p68, %p69
      %p71 = scmp.ne.s32.totalorder %s60, %s63
      %p72 = scmp.eq.s32.totalorder %s17, 1
      %p73 = por %p71, %p72
      %p74 = scmp.ne.s32.totalorder %s63, %s64
      %p75 = scmp.eq.s32.totalorder %s17, 0
      %p76 = por %p74, %p75
      %p77 = scmp.ne.s32.totalorder %s63, %s64
      %p78 = scmp.eq.s32.totalorder %s18, 1
      %p79 = por %p77, %p78
      %p81 = scmp.ne.s32.totalorder %s64, %s80
      %p82 = scmp.eq.s32.totalorder %s18, 0
      %p83 = por %p81, %p82
      %s84 = ssub.s32 %s19, %s31
      %p85 = scmp.eq.s32.totalorder %s84, 0
      %s87 = sadd.s32 %s86, 1
      %s88 = scalar_select %p85, %s86, %s87
      %p91 = pneg %p85
      %p92 = scmp.eq.s32.totalorder %s12, 1
      %p93 = por %p91, %p92
      %p94 = scmp.ne.s32.totalorder %s86, %s89
      %p95 = scmp.eq.s32.totalorder %s12, 0
      %p96 = por %p94, %p95
      %p97 = scmp.ne.s32.totalorder %s86, %s89
      %p98 = scmp.eq.s32.totalorder %s17, 1
      %p99 = por %p97, %p98
      %p100 = scmp.ne.s32.totalorder %s89, %s90
      %p101 = scmp.eq.s32.totalorder %s17, 0
      %p102 = por %p100, %p101
      %p103 = scmp.ne.s32.totalorder %s89, %s90
      %p104 = scmp.eq.s32.totalorder %s18, 1
      %p105 = por %p103, %p104
      %p107 = scmp.ne.s32.totalorder %s90, %s106
      %p108 = scmp.eq.s32.totalorder %s18, 0
      %p109 = por %p107, %p108
      %s110 = ssub.s32 %s20, %s27
      %s111 = ssub.s32 %s19, %s31
      %s112 = sor.u32 %s110, %s111
      %p113 = scmp.eq.s32.totalorder %s112, 0
      %s115 = sadd.s32 %s114, 1
      %s116 = scalar_select %p113, %s114, %s115
      %p119 = pneg %p113
      %p120 = scmp.eq.s32.totalorder %s12, 1
      %p121 = por %p119, %p120
      %p122 = scmp.ne.s32.totalorder %s114, %s117
      %p123 = scmp.eq.s32.totalorder %s12, 0
      %p124 = por %p122, %p123
      %p125 = scmp.ne.s32.totalorder %s114, %s117
      %p126 = scmp.eq.s32.totalorder %s17, 1
      %p127 = por %p125, %p126
      %p128 = scmp.ne.s32.totalorder %s117, %s118
      %p129 = scmp.eq.s32.totalorder %s17, 0
      %p130 = por %p128, %p129
      %p131 = scmp.ne.s32.totalorder %s117, %s118
      %p132 = scmp.eq.s32.totalorder %s18, 1
      %p133 = por %p131, %p132
      %p135 = scmp.ne.s32.totalorder %s118, %s134
      %p136 = scmp.eq.s32.totalorder %s18, 0
      %p137 = por %p135, %p136
      %p138 = scmp.le.s32.totalorder 1, %s12
      %p139 = scmp.lt.s32.totalorder %s12, 3
      %p140 = pnand %p138, %p139
      %p141 = pneg %p140
      // Predicated region
      $region9: #{tpu_custom_call.1} parent=5 // pred_check
        _
      $region10: #{tpu_custom_call.1} parent=5 // pred_check_branch
        %143 = sbr.rel (%p140) target = $region12
      $region11: #{tpu_custom_call.1} parent=5 // pred_region
        %s144 = ssub.s32 %s12, 1
        // Predicated region
        $region13: #{tpu_custom_call.1} parent=11 // pred_check
          %p145 = pneg %p76
        $region14: #{tpu_custom_call.1} parent=11 // pred_check_branch
          %147 = sbr.rel (%p145) target = $region16
        $region15: #{tpu_custom_call.1} parent=11 // pred_region
          %p148 = scmp.lt.s32.totalorder %s21, 0
          %s149 = scalar_select %p148, %s21, 0
          %s150 = smul.addr %s149, 4
          %s151 = scalar_lea.vmem %s1, %s150
        $region16: #{tpu_custom_call.1} parent=11 // pred_fallthru
          _
        // Predicated region
        $region17: #{tpu_custom_call.1} parent=11 // pred_check
          %p152 = pneg %p102
        $region18: #{tpu_custom_call.1} parent=11 // pred_check_branch
          %154 = sbr.rel (%p152) target = $region20
        $region19: #{tpu_custom_call.1} parent=11 // pred_region
          %p155 = scmp.lt.s32.totalorder %s21, 0
          %s156 = scalar_select %p155, %s21, 0
          %s157 = smul.addr %s156, 8
          %s158 = scalar_lea.vmem %s2, %s157
        $region20: #{tpu_custom_call.1} parent=11 // pred_fallthru
          _
      $region12: #{tpu_custom_call.1} parent=5 // pred_fallthru
        _
      %p159 = scmp.lt.s32.totalorder %s12, 2
      // Predicated region
      $region21: #{tpu_custom_call.1} parent=5 // pred_check
        %p160 = pneg %p159
      $region22: #{tpu_custom_call.1} parent=5 // pred_check_branch
        %162 = sbr.rel (%p160) target = $region24
      $region23: #{tpu_custom_call.1} parent=5 // pred_region
        // Predicated region
        $region25: #{tpu_custom_call.1} parent=23 // pred_check
          %p163 = pneg %p44
        $region26: #{tpu_custom_call.1} parent=23 // pred_check_branch
          %165 = sbr.rel (%p163) target = $region28
        $region27: #{tpu_custom_call.1} parent=23 // pred_region
          %s166 = smul.u32 32, %s20
          %p167 = scmp.lt.s32.totalorder %s166, 63
          %s168 = scalar_select %p167, %s166, 63
          %s169 = smul.addr %s168, 4
          %s170 = scalar_lea.vmem %s0, %s169
          %s171 = smul.u32 32, %s20
        $region28: #{tpu_custom_call.1} parent=23 // pred_fallthru
          _
      $region24: #{tpu_custom_call.1} parent=5 // pred_fallthru
        _
      %p172 = scmp.le.s32.totalorder 1, %s12
      %p173 = scmp.lt.s32.totalorder %s12, 3
      %p174 = pnand %p172, %p173
      %p175 = pneg %p174
      // Predicated region
      $region29: #{tpu_custom_call.1} parent=5 // pred_check
        _
      $region30: #{tpu_custom_call.1} parent=5 // pred_check_branch
        %177 = sbr.rel (%p174) target = $region32
      $region31: #{tpu_custom_call.1} parent=5 // pred_region
        %s178 = ssub.s32 %s12, 1
        %s179 = smul.u32 32, %s22
        %p180 = scmp.lt.s32.totalorder %s179, 63
        %s181 = scalar_select %p180, %s179, 63
        %s182 = smul.addr %s181, 4
        %s183 = scalar_lea.vmem %s0, %s182
        %p184 = pneg %p50
        %p185 = pneg %p47
        %p186 = scmp.lt.s32.totalorder %s21, 0
        %s187 = scalar_select %p186, %s21, 0
        %s188 = smul.addr %s187, 4
        %s189 = scalar_lea.vmem %s1, %s188
        %p190 = pneg %p76
        %p191 = pneg %p73
        %p192 = scmp.lt.s32.totalorder %s21, 0
        %s193 = scalar_select %p192, %s21, 0
        %s194 = smul.addr %s193, 8
        %s195 = scalar_lea.vmem %s2, %s194
        %p196 = pneg %p102
        %p197 = pneg %p99
        %p198 = pneg %p130
        %p199 = pneg %p127
        %s200 = sand.u32 %s117, 1
        %s201 = scalar_lea.sflag [#allocation3], %s200
        %s202 = sand.u32 %s117, 1
        %s203 = smul.addr %s202, 256
        %s204 = scalar_lea.vmem [#allocation2], %s203
        %s205 = smul.u32 32, %s22
        %p206 = scmp.lt.s32.totalorder %s205, 63
        %s207 = scalar_select %p206, %s205, 63
        %s208 = smul.addr %s207, 4
        %s209 = scalar_lea.vmem %s0, %s208
        %s210 = smul.u32 32, %s22
        %p211 = scmp.lt.s32.totalorder %s21, 0
        %s212 = scalar_select %p211, %s21, 0
        %s213 = smul.addr %s212, 4
        %s214 = scalar_lea.vmem %s1, %s213
        %p215 = scmp.lt.s32.totalorder %s21, 0
        %s216 = scalar_select %p215, %s21, 0
        %s217 = smul.addr %s216, 8
        %s218 = scalar_lea.vmem %s2, %s217
        %s219 = smul.u32 32, %s22
        %v221 = vld [vmem:[%s209] sm:$0xf]
        %v222 = vld [vmem:[%s209 + $0x4] sm:$0xf]
        %v223 = vld [vmem:[%s209 + $0x8] sm:$0xf]
        %v224 = vld [vmem:[%s209 + $0xc] sm:$0xf]
        %v225 = vld [vmem:[%s209 + $0x10] sm:$0xf]
        %v226 = vld [vmem:[%s209 + $0x14] sm:$0xf]
        %v227 = vld [vmem:[%s209 + $0x18] sm:$0xf]
        %v228 = vld [vmem:[%s209 + $0x1c] sm:$0xf]
        %v229 = vld [vmem:[%s209 + $0x20] sm:$0xf]
        %v230 = vld [vmem:[%s209 + $0x24] sm:$0xf]
        %v231 = vld [vmem:[%s209 + $0x28] sm:$0xf]
        %v232 = vld [vmem:[%s209 + $0x2c] sm:$0xf]
        %v233 = vld [vmem:[%s209 + $0x30] sm:$0xf]
        %v234 = vld [vmem:[%s209 + $0x34] sm:$0xf]
        %v235 = vld [vmem:[%s209 + $0x38] sm:$0xf]
        %v236 = vld [vmem:[%s209 + $0x3c] sm:$0xf]
        %v237 = vld [vmem:[%s209 + $0x40] sm:$0xf]
        %v238 = vld [vmem:[%s209 + $0x44] sm:$0xf]
        %v239 = vld [vmem:[%s209 + $0x48] sm:$0xf]
        %v240 = vld [vmem:[%s209 + $0x4c] sm:$0xf]
        %v241 = vld [vmem:[%s209 + $0x50] sm:$0xf]
        %v242 = vld [vmem:[%s209 + $0x54] sm:$0xf]
        %v243 = vld [vmem:[%s209 + $0x58] sm:$0xf]
        %v244 = vld [vmem:[%s209 + $0x5c] sm:$0xf]
        %v245 = vld [vmem:[%s209 + $0x60] sm:$0xf]
        %v246 = vld [vmem:[%s209 + $0x64] sm:$0xf]
        %v247 = vld [vmem:[%s209 + $0x68] sm:$0xf]
        %v248 = vld [vmem:[%s209 + $0x6c] sm:$0xf]
        %v249 = vld [vmem:[%s209 + $0x70] sm:$0xf]
        %v250 = vld [vmem:[%s209 + $0x74] sm:$0xf]
        %v251 = vld [vmem:[%s209 + $0x78] sm:$0xf]
        %v252 = vld [vmem:[%s209 + $0x7c] sm:$0xf]
        %v253 = vld [vmem:[%s214] sm:$0xf]
        %v254 = vld [vmem:[%s214 + $0x4] sm:$0xf]
        %v255 = vld [vmem:[%s214 + $0x8] sm:$0xf]
        %v256 = vld [vmem:[%s214 + $0xc] sm:$0xf]
        %v257 = vld [vmem:[%s214 + $0x10] sm:$0xf]
        %v258 = vld [vmem:[%s214 + $0x14] sm:$0xf]
        %v291 = vunpack.c.l.b16 %v221
        %v292 = vunpack.c.l.b16 %v222
        %v293 = vunpack.c.l.b16 %v223
        %v294 = vunpack.c.l.b16 %v224
        %v295 = vunpack.c.l.b16 %v225
        %v296 = vunpack.c.l.b16 %v226
        %v297 = vunpack.c.l.b16 %v227
        %v298 = vunpack.c.l.b16 %v228
        %v299 = vunpack.c.l.b16 %v229
        %v300 = vunpack.c.l.b16 %v230
        %v301 = vunpack.c.l.b16 %v231
        %v302 = vunpack.c.l.b16 %v232
        %v303 = vunpack.c.l.b16 %v233
        %v304 = vunpack.c.l.b16 %v234
        %v305 = vunpack.c.l.b16 %v235
        %v306 = vunpack.c.l.b16 %v236
        %v307 = vunpack.c.l.b16 %v237
        %v308 = vunpack.c.l.b16 %v238
        %v309 = vunpack.c.l.b16 %v239
        %v310 = vunpack.c.l.b16 %v240
        %v311 = vunpack.c.l.b16 %v241
        %v312 = vunpack.c.l.b16 %v242
        %v313 = vunpack.c.l.b16 %v243
        %v314 = vunpack.c.l.b16 %v244
        %v315 = vunpack.c.l.b16 %v245
        %v316 = vunpack.c.l.b16 %v246
        %v317 = vunpack.c.l.b16 %v247
        %v318 = vunpack.c.l.b16 %v248
        %v319 = vunpack.c.l.b16 %v249
        %v320 = vunpack.c.l.b16 %v250
        %v321 = vunpack.c.l.b16 %v251
        %v322 = vunpack.c.l.b16 %v252
        %v323 = vpack.c.b16 %v292, %v291
        %v324 = vpack.c.b16 %v294, %v293
        %v325 = vpack.c.b16 %v296, %v295
        %v326 = vpack.c.b16 %v298, %v297
        %v327 = vpack.c.b16 %v300, %v299
        %v328 = vpack.c.b16 %v302, %v301
        %v329 = vpack.c.b16 %v304, %v303
        %v330 = vpack.c.b16 %v306, %v305
        %v331 = vpack.c.b16 %v308, %v307
        %v332 = vpack.c.b16 %v310, %v309
        %v333 = vpack.c.b16 %v312, %v311
        %v334 = vpack.c.b16 %v314, %v313
        %v335 = vpack.c.b16 %v316, %v315
        %v336 = vpack.c.b16 %v318, %v317
        %v337 = vpack.c.b16 %v320, %v319
        %v338 = vpack.c.b16 %v322, %v321
        %v345 = vunpack.c.l.b16 %v253
        %v346 = vunpack.c.l.b16 %v254
        %v347 = vunpack.c.l.b16 %v255
        %v348 = vunpack.c.l.b16 %v256
        %v349 = vunpack.c.l.b16 %v257
        %v350 = vunpack.c.l.b16 %v258
        %v351 = vpack.c.b16 %v346, %v345
        %v352 = vpack.c.b16 %v348, %v347
        %v353 = vpack.c.b16 %v350, %v349
        %vm357 = vcmask 392192
        %v359 = vsel %vm357, %v323, 0
        %v362 = vsel %vm357, %v324, 0
        %v365 = vsel %vm357, %v325, 0
        %v368 = vsel %vm357, %v326, 0
        %v371 = vsel %vm357, %v327, 0
        %v374 = vsel %vm357, %v328, 0
        %v377 = vsel %vm357, %v329, 0
        %v380 = vsel %vm357, %v330, 0
        %v383 = vsel %vm357, %v331, 0
        %v386 = vsel %vm357, %v332, 0
        %v389 = vsel %vm357, %v333, 0
        %v392 = vsel %vm357, %v334, 0
        %v395 = vsel %vm357, %v335, 0
        %v398 = vsel %vm357, %v336, 0
        %v401 = vsel %vm357, %v337, 0
        %v404 = vsel %vm357, %v338, 0
        %406 = vmatprep.subr.bf16.mxu0 0
        %407 = vmatpush1.bf16.msra.mxu0 %v351
        %408 = vmatprep.subr.bf16.mxu0 0
        %409 = vmatpush1.bf16.msra.mxu0 %v352
        %410 = vmatprep.subr.bf16.mxu0 0
        %411 = vmatpush1.bf16.msra.mxu0 %v353
        %412 = vmatprep.subr.bf16.mxu0 0
        %413 = vmatpush1.bf16.msra.mxu0 0
        %414 = vmatprep.subr.bf16.mxu0 0
        %415 = vmatpush1.bf16.msra.mxu0 0
        %416 = vmatprep.subr.bf16.mxu0 0
        %417 = vmatpush1.bf16.msra.mxu0 0
        %418 = vmatprep.subr.bf16.mxu0 0
        %419 = vmatpush1.bf16.msra.mxu0 0
        %420 = vmatprep.subr.bf16.mxu0 0
        %421 = vmatpush1.bf16.msra.mxu0 0
        %422 = vmatprep.subr.bf16.mxu0 0
        %423 = vmatpush1.bf16.msra.mxu0 0
        %424 = vmatprep.subr.bf16.mxu0 0
        %425 = vmatpush1.bf16.msra.mxu0 0
        %426 = vmatprep.subr.bf16.mxu0 0
        %427 = vmatpush1.bf16.msra.mxu0 0
        %428 = vmatprep.subr.bf16.mxu0 0
        %429 = vmatpush1.bf16.msra.mxu0 0
        %430 = vmatprep.subr.bf16.mxu0 0
        %431 = vmatpush1.bf16.msra.mxu0 0
        %432 = vmatprep.subr.bf16.mxu0 0
        %433 = vmatpush1.bf16.msra.mxu0 0
        %434 = vmatprep.subr.bf16.mxu0 0
        %435 = vmatpush1.bf16.msra.mxu0 0
        %436 = vmatprep.subr.bf16.mxu0 0
        %437 = vmatpush1.bf16.msra.mxu0 0
        %438 = vmatprep.mubr.bf16.mxu0 0
        %439 = vmatmul.mubr.bf16.gmra.mrb[0].mxu0 %v359
        %v440 = vpop.f32.mrb[0].mxu0
        %v441 = vadd.f32 0.0, %v440
        %v442 = vpop.f32.mrb[0].mxu0
        %v443 = vpop.f32.mrb[0].mxu0
        %v444 = vadd.f32 0.0, %v443
        %v445 = vpop.f32.mrb[0].mxu0
        %446 = vmatprep.mubr.bf16.mxu0 0
        %447 = vmatmul.mubr.bf16.gmra.mrb[0].mxu0 %v362
        %v448 = vpop.f32.mrb[0].mxu0
        %v449 = vadd.f32 0.0, %v448
        %v450 = vpop.f32.mrb[0].mxu0
        %v451 = vpop.f32.mrb[0].mxu0
        %v452 = vadd.f32 0.0, %v451
        %v453 = vpop.f32.mrb[0].mxu0
        %454 = vmatprep.mubr.bf16.mxu0 0
        %455 = vmatmul.mubr.bf16.gmra.mrb[0].mxu0 %v365
        %v456 = vpop.f32.mrb[0].mxu0
        %v457 = vadd.f32 0.0, %v456
        %v458 = vpop.f32.mrb[0].mxu0
        %v459 = vpop.f32.mrb[0].mxu0
        %v460 = vadd.f32 0.0, %v459
        %v461 = vpop.f32.mrb[0].mxu0
        %462 = vmatprep.mubr.bf16.mxu0 0
        %463 = vmatmul.mubr.bf16.gmra.mrb[0].mxu0 %v368
        %v464 = vpop.f32.mrb[0].mxu0
        %v465 = vadd.f32 0.0, %v464
        %v466 = vpop.f32.mrb[0].mxu0
        %v467 = vpop.f32.mrb[0].mxu0
        %v468 = vadd.f32 0.0, %v467
        %v469 = vpop.f32.mrb[0].mxu0
        %470 = vmatprep.mubr.bf16.mxu0 0
        %471 = vmatmul.mubr.bf16.gmra.mrb[0].mxu0 %v371
        %v472 = vpop.f32.mrb[0].mxu0
        %v473 = vadd.f32 0.0, %v472
        %v474 = vpop.f32.mrb[0].mxu0
        %v475 = vpop.f32.mrb[0].mxu0
        %v476 = vadd.f32 0.0, %v475
        %v477 = vpop.f32.mrb[0].mxu0
        %478 = vmatprep.mubr.bf16.mxu0 0
        %479 = vmatmul.mubr.bf16.gmra.mrb[0].mxu0 %v374
        %v480 = vpop.f32.mrb[0].mxu0
        %v481 = vadd.f32 0.0, %v480
        %v482 = vpop.f32.mrb[0].mxu0
        %v483 = vpop.f32.mrb[0].mxu0
        %v484 = vadd.f32 0.0, %v483
        %v485 = vpop.f32.mrb[0].mxu0
        %486 = vmatprep.mubr.bf16.mxu0 0
        %487 = vmatmul.mubr.bf16.gmra.mrb[0].mxu0 %v377
        %v488 = vpop.f32.mrb[0].mxu0
        %v489 = vadd.f32 0.0, %v488
        %v490 = vpop.f32.mrb[0].mxu0
        %v491 = vpop.f32.mrb[0].mxu0
        %v492 = vadd.f32 0.0, %v491
        %v493 = vpop.f32.mrb[0].mxu0
        %494 = vmatprep.mubr.bf16.mxu0 0
        %495 = vmatmul.mubr.bf16.gmra.mrb[0].mxu0 %v380
        %v496 = vpop.f32.mrb[0].mxu0
        %v497 = vadd.f32 0.0, %v496
        %v498 = vpop.f32.mrb[0].mxu0
        %v499 = vpop.f32.mrb[0].mxu0
        %v500 = vadd.f32 0.0, %v499
        %v501 = vpop.f32.mrb[0].mxu0
        %502 = vmatprep.mubr.bf16.mxu0 0
        %503 = vmatmul.mubr.bf16.gmra.mrb[0].mxu0 %v383
        %v504 = vpop.f32.mrb[0].mxu0
        %v505 = vadd.f32 0.0, %v504
        %v506 = vpop.f32.mrb[0].mxu0
        %v507 = vpop.f32.mrb[0].mxu0
        %v508 = vadd.f32 0.0, %v507
        %v509 = vpop.f32.mrb[0].mxu0
        %510 = vmatprep.mubr.bf16.mxu0 0
        %511 = vmatmul.mubr.bf16.gmra.mrb[0].mxu0 %v386
        %v512 = vpop.f32.mrb[0].mxu0
        %v513 = vadd.f32 0.0, %v512
        %v514 = vpop.f32.mrb[0].mxu0
        %v515 = vpop.f32.mrb[0].mxu0
        %v516 = vadd.f32 0.0, %v515
        %v517 = vpop.f32.mrb[0].mxu0
        %518 = vmatprep.mubr.bf16.mxu0 0
        %519 = vmatmul.mubr.bf16.gmra.mrb[0].mxu0 %v389
        %v520 = vpop.f32.mrb[0].mxu0
        %v521 = vadd.f32 0.0, %v520
        %v522 = vpop.f32.mrb[0].mxu0
        %v523 = vpop.f32.mrb[0].mxu0
        %v524 = vadd.f32 0.0, %v523
        %v525 = vpop.f32.mrb[0].mxu0
        %526 = vmatprep.mubr.bf16.mxu0 0
        %527 = vmatmul.mubr.bf16.gmra.mrb[0].mxu0 %v392
        %v528 = vpop.f32.mrb[0].mxu0
        %v529 = vadd.f32 0.0, %v528
        %v530 = vpop.f32.mrb[0].mxu0
        %v531 = vpop.f32.mrb[0].mxu0
        %v532 = vadd.f32 0.0, %v531
        %v533 = vpop.f32.mrb[0].mxu0
        %534 = vmatprep.mubr.bf16.mxu0 0
        %535 = vmatmul.mubr.bf16.gmra.mrb[0].mxu0 %v395
        %v536 = vpop.f32.mrb[0].mxu0
        %v537 = vadd.f32 0.0, %v536
        %v538 = vpop.f32.mrb[0].mxu0
        %v539 = vpop.f32.mrb[0].mxu0
        %v540 = vadd.f32 0.0, %v539
        %v541 = vpop.f32.mrb[0].mxu0
        %542 = vmatprep.mubr.bf16.mxu0 0
        %543 = vmatmul.mubr.bf16.gmra.mrb[0].mxu0 %v398
        %v544 = vpop.f32.mrb[0].mxu0
        %v545 = vadd.f32 0.0, %v544
        %v546 = vpop.f32.mrb[0].mxu0
        %v547 = vpop.f32.mrb[0].mxu0
        %v548 = vadd.f32 0.0, %v547
        %v549 = vpop.f32.mrb[0].mxu0
        %550 = vmatprep.mubr.bf16.mxu0 0
        %551 = vmatmul.mubr.bf16.gmra.mrb[0].mxu0 %v401
        %v552 = vpop.f32.mrb[0].mxu0
        %v553 = vadd.f32 0.0, %v552
        %v554 = vpop.f32.mrb[0].mxu0
        %v555 = vpop.f32.mrb[0].mxu0
        %v556 = vadd.f32 0.0, %v555
        %v557 = vpop.f32.mrb[0].mxu0
        %558 = vmatprep.mubr.bf16.mxu0 0
        %559 = vmatmul.mubr.bf16.gmra.mrb[0].mxu0 %v404
        %v560 = vpop.f32.mrb[0].mxu0
        %v561 = vadd.f32 0.0, %v560
        %v562 = vpop.f32.mrb[0].mxu0
        %v563 = vpop.f32.mrb[0].mxu0
        %v564 = vadd.f32 0.0, %v563
        %v565 = vpop.f32.mrb[0].mxu0
        %566 = vdwg.mxu0
        %v567 = vld [vmem:[%s218] sm:$0x1]
        %v568 = vlaneseq
        %v569 = vshrl.u32 %v568, 7
        %v570 = vsub.s32 0, %v569
        %v571 = vrot.slane %v567, %v570
        %v572 = vmul.f32 %v441, %v571
        %v573 = vmul.f32 %v444, %v571
        %v574 = vmul.f32 %v449, %v571
        %v575 = vmul.f32 %v452, %v571
        %v576 = vmul.f32 %v457, %v571
        %v577 = vmul.f32 %v460, %v571
        %v578 = vmul.f32 %v465, %v571
        %v579 = vmul.f32 %v468, %v571
        %v580 = vmul.f32 %v473, %v571
        %v581 = vmul.f32 %v476, %v571
        %v582 = vmul.f32 %v481, %v571
        %v583 = vmul.f32 %v484, %v571
        %v584 = vmul.f32 %v489, %v571
        %v585 = vmul.f32 %v492, %v571
        %v586 = vmul.f32 %v497, %v571
        %v587 = vmul.f32 %v500, %v571
        %v588 = vmul.f32 %v505, %v571
        %v589 = vmul.f32 %v508, %v571
        %v590 = vmul.f32 %v513, %v571
        %v591 = vmul.f32 %v516, %v571
        %v592 = vmul.f32 %v521, %v571
        %v593 = vmul.f32 %v524, %v571
        %v594 = vmul.f32 %v529, %v571
        %v595 = vmul.f32 %v532, %v571
        %v596 = vmul.f32 %v537, %v571
        %v597 = vmul.f32 %v540, %v571
        %v598 = vmul.f32 %v545, %v571
        %v599 = vmul.f32 %v548, %v571
        %v600 = vmul.f32 %v553, %v571
        %v601 = vmul.f32 %v556, %v571
        %v602 = vmul.f32 %v561, %v571
        %v603 = vmul.f32 %v564, %v571
        %v604 = vld [vmem:[%s218 + $0x1] sm:$0x1]
        %v605 = vlaneseq
        %v606 = vshrl.u32 %v605, 7
        %v607 = vsub.s32 0, %v606
        %v608 = vrot.slane %v604, %v607
        %v609 = vadd.f32 %v572, %v608
        %v610 = vadd.f32 %v573, %v608
        %v611 = vadd.f32 %v574, %v608
        %v612 = vadd.f32 %v575, %v608
        %v613 = vadd.f32 %v576, %v608
        %v614 = vadd.f32 %v577, %v608
        %v615 = vadd.f32 %v578, %v608
        %v616 = vadd.f32 %v579, %v608
        %v617 = vadd.f32 %v580, %v608
        %v618 = vadd.f32 %v581, %v608
        %v619 = vadd.f32 %v582, %v608
        %v620 = vadd.f32 %v583, %v608
        %v621 = vadd.f32 %v584, %v608
        %v622 = vadd.f32 %v585, %v608
        %v623 = vadd.f32 %v586, %v608
        %v624 = vadd.f32 %v587, %v608
        %v625 = vadd.f32 %v588, %v608
        %v626 = vadd.f32 %v589, %v608
        %v627 = vadd.f32 %v590, %v608
        %v628 = vadd.f32 %v591, %v608
        %v629 = vadd.f32 %v592, %v608
        %v630 = vadd.f32 %v593, %v608
        %v631 = vadd.f32 %v594, %v608
        %v632 = vadd.f32 %v595, %v608
        %v633 = vadd.f32 %v596, %v608
        %v634 = vadd.f32 %v597, %v608
        %v635 = vadd.f32 %v598, %v608
        %v636 = vadd.f32 %v599, %v608
        %v637 = vadd.f32 %v600, %v608
        %v638 = vadd.f32 %v601, %v608
        %v639 = vadd.f32 %v602, %v608
        %v640 = vadd.f32 %v603, %v608
        %vm641 = vcmp.ge.f32.partialorder %v609, 0.0
        %vm642 = vcmp.ge.f32.partialorder %v610, 0.0
        %vm643 = vcmp.ge.f32.partialorder %v611, 0.0
        %vm644 = vcmp.ge.f32.partialorder %v612, 0.0
        %vm645 = vcmp.ge.f32.partialorder %v613, 0.0
        %vm646 = vcmp.ge.f32.partialorder %v614, 0.0
        %vm647 = vcmp.ge.f32.partialorder %v615, 0.0
        %vm648 = vcmp.ge.f32.partialorder %v616, 0.0
        %vm649 = vcmp.ge.f32.partialorder %v617, 0.0
        %vm650 = vcmp.ge.f32.partialorder %v618, 0.0
        %vm651 = vcmp.ge.f32.partialorder %v619, 0.0
        %vm652 = vcmp.ge.f32.partialorder %v620, 0.0
        %vm653 = vcmp.ge.f32.partialorder %v621, 0.0
        %vm654 = vcmp.ge.f32.partialorder %v622, 0.0
        %vm655 = vcmp.ge.f32.partialorder %v623, 0.0
        %vm656 = vcmp.ge.f32.partialorder %v624, 0.0
        %vm657 = vcmp.ge.f32.partialorder %v625, 0.0
        %vm658 = vcmp.ge.f32.partialorder %v626, 0.0
        %vm659 = vcmp.ge.f32.partialorder %v627, 0.0
        %vm660 = vcmp.ge.f32.partialorder %v628, 0.0
        %vm661 = vcmp.ge.f32.partialorder %v629, 0.0
        %vm662 = vcmp.ge.f32.partialorder %v630, 0.0
        %vm663 = vcmp.ge.f32.partialorder %v631, 0.0
        %vm664 = vcmp.ge.f32.partialorder %v632, 0.0
        %vm665 = vcmp.ge.f32.partialorder %v633, 0.0
        %vm666 = vcmp.ge.f32.partialorder %v634, 0.0
        %vm667 = vcmp.ge.f32.partialorder %v635, 0.0
        %vm668 = vcmp.ge.f32.partialorder %v636, 0.0
        %vm669 = vcmp.ge.f32.partialorder %v637, 0.0
        %vm670 = vcmp.ge.f32.partialorder %v638, 0.0
        %vm671 = vcmp.ge.f32.partialorder %v639, 0.0
        %vm672 = vcmp.ge.f32.partialorder %v640, 0.0
        %v673 = vld [vmem:[%s218 + $0x2] sm:$0x1]
        %v674 = vlaneseq
        %v675 = vshrl.u32 %v674, 7
        %v676 = vsub.s32 0, %v675
        %v677 = vrot.slane %v673, %v676
        %v678 = vmul.f32 %v677, %v609
        %v679 = vmul.f32 %v677, %v610
        %v680 = vmul.f32 %v677, %v611
        %v681 = vmul.f32 %v677, %v612
        %v682 = vmul.f32 %v677, %v613
        %v683 = vmul.f32 %v677, %v614
        %v684 = vmul.f32 %v677, %v615
        %v685 = vmul.f32 %v677, %v616
        %v686 = vmul.f32 %v677, %v617
        %v687 = vmul.f32 %v677, %v618
        %v688 = vmul.f32 %v677, %v619
        %v689 = vmul.f32 %v677, %v620
        %v690 = vmul.f32 %v677, %v621
        %v691 = vmul.f32 %v677, %v622
        %v692 = vmul.f32 %v677, %v623
        %v693 = vmul.f32 %v677, %v624
        %v694 = vmul.f32 %v677, %v625
        %v695 = vmul.f32 %v677, %v626
        %v696 = vmul.f32 %v677, %v627
        %v697 = vmul.f32 %v677, %v628
        %v698 = vmul.f32 %v677, %v629
        %v699 = vmul.f32 %v677, %v630
        %v700 = vmul.f32 %v677, %v631
        %v701 = vmul.f32 %v677, %v632
        %v702 = vmul.f32 %v677, %v633
        %v703 = vmul.f32 %v677, %v634
        %v704 = vmul.f32 %v677, %v635
        %v705 = vmul.f32 %v677, %v636
        %v706 = vmul.f32 %v677, %v637
        %v707 = vmul.f32 %v677, %v638
        %v708 = vmul.f32 %v677, %v639
        %v709 = vmul.f32 %v677, %v640
        %v710 = vsel %vm641, %v609, %v678
        %v711 = vsel %vm642, %v610, %v679
        %v712 = vsel %vm643, %v611, %v680
        %v713 = vsel %vm644, %v612, %v681
        %v714 = vsel %vm645, %v613, %v682
        %v715 = vsel %vm646, %v614, %v683
        %v716 = vsel %vm647, %v615, %v684
        %v717 = vsel %vm648, %v616, %v685
        %v718 = vsel %vm649, %v617, %v686
        %v719 = vsel %vm650, %v618, %v687
        %v720 = vsel %vm651, %v619, %v688
        %v721 = vsel %vm652, %v620, %v689
        %v722 = vsel %vm653, %v621, %v690
        %v723 = vsel %vm654, %v622, %v691
        %v724 = vsel %vm655, %v623, %v692
        %v725 = vsel %vm656, %v624, %v693
        %v726 = vsel %vm657, %v625, %v694
        %v727 = vsel %vm658, %v626, %v695
        %v728 = vsel %vm659, %v627, %v696
        %v729 = vsel %vm660, %v628, %v697
        %v730 = vsel %vm661, %v629, %v698
        %v731 = vsel %vm662, %v630, %v699
        %v732 = vsel %vm663, %v631, %v700
        %v733 = vsel %vm664, %v632, %v701
        %v734 = vsel %vm665, %v633, %v702
        %v735 = vsel %vm666, %v634, %v703
        %v736 = vsel %vm667, %v635, %v704
        %v737 = vsel %vm668, %v636, %v705
        %v738 = vsel %vm669, %v637, %v706
        %v739 = vsel %vm670, %v638, %v707
        %v740 = vsel %vm671, %v639, %v708
        %v741 = vsel %vm672, %v640, %v709
        %742 = vst [vmem:[%s204] sm:$0xff] %v710
        %743 = vst [vmem:[%s204 + $0x8] sm:$0xff] %v711
        %744 = vst [vmem:[%s204 + $0x10] sm:$0xff] %v712
        %745 = vst [vmem:[%s204 + $0x18] sm:$0xff] %v713
        %746 = vst [vmem:[%s204 + $0x20] sm:$0xff] %v714
        %747 = vst [vmem:[%s204 + $0x28] sm:$0xff] %v715
        %748 = vst [vmem:[%s204 + $0x30] sm:$0xff] %v716
        %749 = vst [vmem:[%s204 + $0x38] sm:$0xff] %v717
        %750 = vst [vmem:[%s204 + $0x40] sm:$0xff] %v718
        %751 = vst [vmem:[%s204 + $0x48] sm:$0xff] %v719
        %752 = vst [vmem:[%s204 + $0x50] sm:$0xff] %v720
        %753 = vst [vmem:[%s204 + $0x58] sm:$0xff] %v721
        %754 = vst [vmem:[%s204 + $0x60] sm:$0xff] %v722
        %755 = vst [vmem:[%s204 + $0x68] sm:$0xff] %v723
        %756 = vst [vmem:[%s204 + $0x70] sm:$0xff] %v724
        %757 = vst [vmem:[%s204 + $0x78] sm:$0xff] %v725
        %758 = vst [vmem:[%s204 + $0x80] sm:$0xff] %v726
        %759 = vst [vmem:[%s204 + $0x88] sm:$0xff] %v727
        %760 = vst [vmem:[%s204 + $0x90] sm:$0xff] %v728
        %761 = vst [vmem:[%s204 + $0x98] sm:$0xff] %v729
        %762 = vst [vmem:[%s204 + $0xa0] sm:$0xff] %v730
        %763 = vst [vmem:[%s204 + $0xa8] sm:$0xff] %v731
        %764 = vst [vmem:[%s204 + $0xb0] sm:$0xff] %v732
        %765 = vst [vmem:[%s204 + $0xb8] sm:$0xff] %v733
        %766 = vst [vmem:[%s204 + $0xc0] sm:$0xff] %v734
        %767 = vst [vmem:[%s204 + $0xc8] sm:$0xff] %v735
        %768 = vst [vmem:[%s204 + $0xd0] sm:$0xff] %v736
        %769 = vst [vmem:[%s204 + $0xd8] sm:$0xff] %v737
        %770 = vst [vmem:[%s204 + $0xe0] sm:$0xff] %v738
        %771 = vst [vmem:[%s204 + $0xe8] sm:$0xff] %v739
        %772 = vst [vmem:[%s204 + $0xf0] sm:$0xff] %v740
        %773 = vst [vmem:[%s204 + $0xf8] sm:$0xff] %v741
        %s774 = sand.u32 %s117, 1
        %s775 = scalar_lea.sflag [#allocation3], %s774
        %s776 = sand.u32 %s117, 1
        %s777 = smul.addr %s776, 256
        %s778 = scalar_lea.vmem [#allocation2], %s777
        // Predicated region
        $region33: #{tpu_custom_call.1} parent=31 // pred_check
          %p779 = pneg %p127
        $region34: #{tpu_custom_call.1} parent=31 // pred_check_branch
          %781 = sbr.rel (%p779) target = $region36
        $region35: #{tpu_custom_call.1} parent=31 // pred_region
          %s782 = smul.u32 32, %s22
          %s784 = ssub.s32 4096, 4096
          %785 = vsyncadd %s775, %s784
          %s786 = sadd.s32 %s21, %s782
          %s787 = smul.addr %s786, 128
          %s788 = scalar_lea.hbm %s3, %s787
          %s789 = sshll.u32 %s778, 4
          %s790 = int_to_ptr.vmem [resolvable:$true] %s789
          %795 = dma.vmem_to_hbm [thread:$0]  %s790, 4096, %s788, %s775, 128, 128, 8
        $region36: #{tpu_custom_call.1} parent=31 // pred_fallthru
          _
      $region32: #{tpu_custom_call.1} parent=5 // pred_fallthru
        _
      %p796 = scmp.le.s32.totalorder 2, %s12
      // Predicated region
      $region37: #{tpu_custom_call.1} parent=5 // pred_check
        %p797 = pneg %p796
      $region38: #{tpu_custom_call.1} parent=5 // pred_check_branch
        %799 = sbr.rel (%p797) target = $region40
      $region39: #{tpu_custom_call.1} parent=5 // pred_region
        %s800 = ssub.s32 %s12, 2
        // Predicated region
        $region41: #{tpu_custom_call.1} parent=39 // pred_check
          %p801 = pneg %p133
        $region42: #{tpu_custom_call.1} parent=39 // pred_check_branch
          %803 = sbr.rel (%p801) target = $region44
        $region43: #{tpu_custom_call.1} parent=39 // pred_region
          %s804 = sand.u32 %s118, 1
          %s805 = scalar_lea.sflag [#allocation3], %s804
          %s806 = sand.u32 %s118, 1
          %s807 = smul.addr %s806, 256
          %s808 = scalar_lea.vmem [#allocation2], %s807
          %809 = dma.done %s805, 4096
        $region44: #{tpu_custom_call.1} parent=39 // pred_fallthru
          _
      $region40: #{tpu_custom_call.1} parent=5 // pred_fallthru
        _
    $region6: #{tpu_custom_call.1} parent=1 // loop_footer
      %s16 = sadd.s32 1, %s12
    $region7: #{tpu_custom_call.1} parent=1 // loop_footer_branch
      %11 = sbr.rel target = $region3
    $region8: #{tpu_custom_call.1} parent=1 // loop_exit
      _
    %810 = vsyncpa [#allocation3], 1
    %s811 = scalar_lea.sflag [#allocation3], 1
    %812 = vsyncpa %s811, 1

</llo_original>
